<compile_context>
chip_gen: v7x
topology: tpu7x:2x2x1
jax: 0.10.0
libtpu: 0.0.40
codegen_flags: <defaults>
</compile_context>

<pallas_src>
import functools

import jax
import jax.numpy as jnp
import numpy as np
from jax.experimental import pallas as pl
from jax.experimental.pallas import tpu as pltpu


def _lsn_kernel(xc_ref, wa_ref, ba_ref, wb_ref, bb_ref, o1_ref, o2_ref):
    """One (batch, column-block) tile per grid step.

    xc_ref: (1, 9*Cin, BLK)  bf16 im2col columns (taps*Cin on sublanes,
                             spatial pixels lane-dense)
    wa_ref: (Cmid, 9*Cin)    bf16 3x3 conv weights with BN_a scale folded in
    ba_ref: (Cmid, 1)        f32 folded BN_a bias
    wb_ref: (Cout, Cmid)     bf16 1x1 conv weights with BN_b scale folded in
    bb_ref: (Cout, 1)        f32 folded BN_b bias
    o1_ref: (1, Cmid, BLK)   ReLU(BN_a(conv3x3(x)))   (channel-major, lane-dense)
    o2_ref: (1, Cout, BLK)   BN_b(conv1x1(out1))
    """
    # conv3x3 (+ folded BN_a scale) as a single MXU matmul, f32 accumulation.
    out1 = jnp.dot(wa_ref[...], xc_ref[0], preferred_element_type=jnp.float32)
    out1 = jnp.maximum(out1 + ba_ref[...], 0.0)
    o1_ref[0] = out1.astype(o1_ref.dtype)

    # conv1x1 (+ folded BN_b scale), no ReLU.
    out2 = jnp.dot(wb_ref[...], out1.astype(wb_ref.dtype),
                   preferred_element_type=jnp.float32)
    o2_ref[0] = (out2 + bb_ref[...]).astype(o2_ref.dtype)


def _pick_col_block(total, max_cols=2048):
    """Pick a lane-dense column block: the full extent when it is small,
    otherwise a divisor of `total` that is a multiple of 128 (keeps the
    (8,128) BlockSpec rule and VMEM per step bounded)."""
    if total <= max_cols:
        return total
    start = max_cols - (max_cols % 128)
    for cand in range(start, 127, -128):
        if total % cand == 0:
            return cand
    return total


def lsn_later_forward(x, wa, ga, bta, ma, va, wb, gb, btb, mb, vb,
                      *, stride=1, eps=1e-5):
    """x: (N, Cin, H, W); wa: (Cmid, Cin, 3, 3); wb: (Cout, Cmid, 1, 1).
    Returns (out1, out2) with shapes (N, Cmid, H, W) and (N, Cout, H, W)."""
    if stride != 1:
        # TODO(synk): stride != 1 not implemented in the Pallas path.
        raise NotImplementedError("Pallas LSN_later path implements stride=1 only")

    N, Cin, H, W = x.shape
    Cmid = wa.shape[0]
    Cout = wb.shape[0]
    HW = H * W
    K9 = 9 * Cin

    # --- Fold inference-mode BatchNorm into per-channel scale/bias ----------
    sa = ga / jnp.sqrt(va + eps)
    ba = bta - ma * sa
    sb = gb / jnp.sqrt(vb + eps)
    bb = btb - mb * sb

    # --- im2col once in the wrapper: (N, 9*Cin, H*W), tap-major rows --------
    x_pad = jnp.pad(x, ((0, 0), (0, 0), (1, 1), (1, 1)))          # NCHW, pad H/W
    patches = []
    for dh in range(3):
        for dw in range(3):
            patches.append(x_pad[:, :, dh:dh + H, dw:dw + W])      # (N, Cin, H, W)
    x_cols = jnp.stack(patches, axis=1)                            # (N, 9, Cin, H, W)
    x_cols = x_cols.reshape(N, K9, HW).astype(jnp.bfloat16)

    # --- Weights: fold BN scale in, flatten taps to match x_cols rows -------
    # (Cmid, Cin, 3, 3) -> (Cmid, kh, kw, Cin) -> (Cmid, 9*Cin): row index
    # (kh*3 + kw)*Cin + c matches x_cols tap-major / channel-minor layout.
    wa_flat = jnp.transpose(wa, (0, 2, 3, 1)).reshape(Cmid, K9)
    wa_scaled = (wa_flat * sa[:, None]).astype(jnp.bfloat16)
    wb_mat = wb[:, :, 0, 0]                                        # (Cout, Cmid)
    wb_scaled = (wb_mat * sb[:, None]).astype(jnp.bfloat16)

    ba2 = ba.reshape(Cmid, 1).astype(jnp.float32)
    bb2 = bb.reshape(Cout, 1).astype(jnp.float32)

    # --- Grid: batch x lane-dense column blocks -----------------------------
    blk = _pick_col_block(HW)
    n_blk = HW // blk
    grid = (N, n_blk)

    flops = int(2 * N * HW * (K9 * Cmid + Cmid * Cout))
    bytes_accessed = int(2 * (x_cols.size + wa_scaled.size + wb_scaled.size)
                         + 4 * (ba2.size + bb2.size)
                         + 4 * N * HW * (Cmid + Cout))

    out1_t, out2_t = pl.pallas_call(
        _lsn_kernel,
        out_shape=(jax.ShapeDtypeStruct((N, Cmid, HW), x.dtype),
                   jax.ShapeDtypeStruct((N, Cout, HW), x.dtype)),
        grid_spec=pltpu.PrefetchScalarGridSpec(
            num_scalar_prefetch=0,
            grid=grid,
            in_specs=[
                pl.BlockSpec((1, K9, blk), lambda n, j: (n, 0, j)),
                pl.BlockSpec((Cmid, K9), lambda n, j: (0, 0)),
                pl.BlockSpec((Cmid, 1), lambda n, j: (0, 0)),
                pl.BlockSpec((Cout, Cmid), lambda n, j: (0, 0)),
                pl.BlockSpec((Cout, 1), lambda n, j: (0, 0)),
            ],
            out_specs=[
                pl.BlockSpec((1, Cmid, blk), lambda n, j: (n, 0, j)),
                pl.BlockSpec((1, Cout, blk), lambda n, j: (n, 0, j)),
            ],
        ),
        compiler_params=pltpu.CompilerParams(
            dimension_semantics=("parallel", "parallel"),
        ),
        cost_estimate=pl.CostEstimate(
            flops=flops, transcendentals=0, bytes_accessed=bytes_accessed),
    )(x_cols, wa_scaled, ba2, wb_scaled, bb2)

    # Channel-major outputs: NCHW restore is a free reshape (no transpose).
    out1 = out1_t.reshape(N, Cmid, H, W)
    out2 = out2_t.reshape(N, Cout, H, W)
    return out1, out2


def _reference(x, wa, ga, bta, ma, va, wb, gb, btb, mb, vb, *, eps=1e-5):
    """Pure-JAX reference matching LSN_later.forward (BN in inference mode)."""
    sa = ga / jnp.sqrt(va + eps)
    ba = bta - ma * sa
    sb = gb / jnp.sqrt(vb + eps)
    bb = btb - mb * sb

    y1 = jax.lax.conv_general_dilated(
        x, wa, window_strides=(1, 1), padding=((1, 1), (1, 1)),
        dimension_numbers=("NCHW", "OIHW", "NCHW"),
        precision=jax.lax.Precision.HIGHEST)
    out1 = jnp.maximum(y1 * sa[None, :, None, None] + ba[None, :, None, None], 0.0)

    y2 = jax.lax.conv_general_dilated(
        out1, wb, window_strides=(1, 1), padding=((0, 0), (0, 0)),
        dimension_numbers=("NCHW", "OIHW", "NCHW"),
        precision=jax.lax.Precision.HIGHEST)
    out2 = y2 * sb[None, :, None, None] + bb[None, :, None, None]
    return out1, out2


if __name__ == "__main__":
    key = jax.random.PRNGKey(0)
    N, Cin, H, W = 2, 4, 16, 16          # batch=2, in_planes=4, spatial=16
    Cout = 32                            # out_planes
    Cmid = Cout // 4                     # inter_planes

    ks = jax.random.split(key, 11)
    x = jax.random.normal(ks[0], (N, Cin, H, W), dtype=jnp.float32)
    wa = jax.random.normal(ks[1], (Cmid, Cin, 3, 3), dtype=jnp.float32) * 0.2
    ga = 1.0 + 0.1 * jax.random.normal(ks[2], (Cmid,), dtype=jnp.float32)
    bta = 0.1 * jax.random.normal(ks[3], (Cmid,), dtype=jnp.float32)
    ma = 0.1 * jax.random.normal(ks[4], (Cmid,), dtype=jnp.float32)
    va = jnp.abs(1.0 + 0.1 * jax.random.normal(ks[5], (Cmid,), dtype=jnp.float32))
    wb = jax.random.normal(ks[6], (Cout, Cmid, 1, 1), dtype=jnp.float32) * 0.2
    gb = 1.0 + 0.1 * jax.random.normal(ks[7], (Cout,), dtype=jnp.float32)
    btb = 0.1 * jax.random.normal(ks[8], (Cout,), dtype=jnp.float32)
    mb = 0.1 * jax.random.normal(ks[9], (Cout,), dtype=jnp.float32)
    vb = jnp.abs(1.0 + 0.1 * jax.random.normal(ks[10], (Cout,), dtype=jnp.float32))

    out1, out2 = lsn_later_forward(x, wa, ga, bta, ma, va, wb, gb, btb, mb, vb)
    out1 = jax.block_until_ready(out1)
    out2 = jax.block_until_ready(out2)

    r1, r2 = _reference(x, wa, ga, bta, ma, va, wb, gb, btb, mb, vb)
    # Tolerance loosened vs. the f32 version: kernel uses bf16 MXU inputs with
    # f32 accumulation; reference is f32 HIGHEST.
    np.testing.assert_allclose(np.asarray(out1), np.asarray(r1), rtol=3e-2, atol=3e-2)
    np.testing.assert_allclose(np.asarray(out2), np.asarray(r2), rtol=3e-2, atol=3e-2)
    assert out1.shape == (N, Cmid, H, W)
    assert out2.shape == (N, Cout, H, W)

    print("KERNEL_OK")
</pallas_src>

<mosaic_0001>
module attributes {stable_mosaic.version = 11 : i64} {
  func.func @_lsn_kernel(%arg0: i32, %arg1: i32, %arg2: memref<1x36x256xbf16, #tpu.memory_space<vmem>>, %arg3: memref<8x36xbf16, #tpu.memory_space<vmem>>, %arg4: memref<8x1xf32, #tpu.memory_space<vmem>>, %arg5: memref<32x8xbf16, #tpu.memory_space<vmem>>, %arg6: memref<32x1xf32, #tpu.memory_space<vmem>>, %arg7: memref<1x8x256xf32, #tpu.memory_space<vmem>>, %arg8: memref<1x32x256xf32, #tpu.memory_space<vmem>>) attributes {dimension_semantics = [#tpu.dimension_semantics<parallel>, #tpu.dimension_semantics<parallel>], iteration_bounds = array<i64: 2, 1>, scalar_prefetch = 0 : i64, scratch_operands = 0 : i64, tpu.core_type = #tpu.core_type<tc>, window_params = [{transform_indices = @transform_0, window_bounds = array<i64: 1, 36, 256>}, {pipeline_mode = #tpu.pipeline_mode<synchronous>, transform_indices = @transform_1, window_bounds = array<i64: 8, 36>}, {pipeline_mode = #tpu.pipeline_mode<synchronous>, transform_indices = @transform_2, window_bounds = array<i64: 8, 1>}, {pipeline_mode = #tpu.pipeline_mode<synchronous>, transform_indices = @transform_3, window_bounds = array<i64: 32, 8>}, {pipeline_mode = #tpu.pipeline_mode<synchronous>, transform_indices = @transform_4, window_bounds = array<i64: 32, 1>}, {transform_indices = @transform_5, window_bounds = array<i64: 1, 8, 256>}, {transform_indices = @transform_6, window_bounds = array<i64: 1, 32, 256>}]} {
    %c0 = arith.constant 0 : index
    %c0_0 = arith.constant 0 : index
    %0 = vector.load %arg3[%c0, %c0_0] : memref<8x36xbf16, #tpu.memory_space<vmem>>, vector<8x36xbf16>
    %c0_1 = arith.constant 0 : index
    %c0_2 = arith.constant 0 : index
    %c0_3 = arith.constant 0 : index
    %1 = vector.load %arg2[%c0_1, %c0_2, %c0_3] : memref<1x36x256xbf16, #tpu.memory_space<vmem>>, vector<1x36x256xbf16>
    %2 = vector.shape_cast %1 : vector<1x36x256xbf16> to vector<36x256xbf16>
    %cst = arith.constant dense<0.000000e+00> : vector<8x256xf32>
    %3 = tpu.matmul %0, %2, %cst {dimension_numbers = #tpu.dot_dimension_numbers<[1], [0], [0], [1], [0, 0, 1, 1], [], []>} : vector<8x36xbf16>, vector<36x256xbf16>, vector<8x256xf32> -> vector<8x256xf32>
    %c0_4 = arith.constant 0 : index
    %c0_5 = arith.constant 0 : index
    %4 = vector.load %arg4[%c0_4, %c0_5] : memref<8x1xf32, #tpu.memory_space<vmem>>, vector<8x1xf32>
    %5 = vector.broadcast %4 : vector<8x1xf32> to vector<8x256xf32>
    %6 = arith.addf %3, %5 : vector<8x256xf32>
    %cst_6 = arith.constant 0.000000e+00 : f32
    %7 = vector.broadcast %cst_6 : f32 to vector<8x256xf32>
    %8 = arith.maximumf %6, %7 : vector<8x256xf32>
    %c0_7 = arith.constant 0 : index
    %c0_8 = arith.constant 0 : index
    %c0_9 = arith.constant 0 : index
    %9 = vector.load %arg7[%c0_7, %c0_8, %c0_9] : memref<1x8x256xf32, #tpu.memory_space<vmem>>, vector<1x8x256xf32>
    %10 = vector.shape_cast %9 : vector<1x8x256xf32> to vector<8x256xf32>
    %11 = vector.shape_cast %8 : vector<8x256xf32> to vector<1x8x256xf32>
    tpu.vector_store %arg7[%c0_7, %c0_8, %c0_9], %11 {strides = array<i32>} : memref<1x8x256xf32, #tpu.memory_space<vmem>>, vector<1x8x256xf32>,
    %c0_10 = arith.constant 0 : index
    %c0_11 = arith.constant 0 : index
    %12 = vector.load %arg5[%c0_10, %c0_11] : memref<32x8xbf16, #tpu.memory_space<vmem>>, vector<32x8xbf16>
    %13 = arith.truncf %8 : vector<8x256xf32> to vector<8x256xbf16>
    %cst_12 = arith.constant dense<0.000000e+00> : vector<32x256xf32>
    %14 = tpu.matmul %12, %13, %cst_12 {dimension_numbers = #tpu.dot_dimension_numbers<[1], [0], [0], [1], [0, 0, 1, 1], [], []>} : vector<32x8xbf16>, vector<8x256xbf16>, vector<32x256xf32> -> vector<32x256xf32>
    %c0_13 = arith.constant 0 : index
    %c0_14 = arith.constant 0 : index
    %15 = vector.load %arg6[%c0_13, %c0_14] : memref<32x1xf32, #tpu.memory_space<vmem>>, vector<32x1xf32>
    %16 = vector.broadcast %15 : vector<32x1xf32> to vector<32x256xf32>
    %17 = arith.addf %14, %16 : vector<32x256xf32>
    %c0_15 = arith.constant 0 : index
    %c0_16 = arith.constant 0 : index
    %c0_17 = arith.constant 0 : index
    %18 = vector.load %arg8[%c0_15, %c0_16, %c0_17] : memref<1x32x256xf32, #tpu.memory_space<vmem>>, vector<1x32x256xf32>
    %19 = vector.shape_cast %18 : vector<1x32x256xf32> to vector<32x256xf32>
    %20 = vector.shape_cast %17 : vector<32x256xf32> to vector<1x32x256xf32>
    tpu.vector_store %arg8[%c0_15, %c0_16, %c0_17], %20 {strides = array<i32>} : memref<1x32x256xf32, #tpu.memory_space<vmem>>, vector<1x32x256xf32>,
    return
  }
  func.func @transform_0(%arg0: i32, %arg1: i32) -> (i32, i32, i32) {
    %c0_i32 = arith.constant 0 : i32
    %c0_i32_0 = arith.constant 0 : i32
    return %arg0, %c0_i32, %arg1 : i32, i32, i32
  }
  func.func @transform_1(%arg0: i32, %arg1: i32) -> (i32, i32) {
    %c0_i32 = arith.constant 0 : i32
    %c0_i32_0 = arith.constant 0 : i32
    %c0_i32_1 = arith.constant 0 : i32
    return %c0_i32, %c0_i32_0 : i32, i32
  }
  func.func @transform_2(%arg0: i32, %arg1: i32) -> (i32, i32) {
    %c0_i32 = arith.constant 0 : i32
    %c0_i32_0 = arith.constant 0 : i32
    %c0_i32_1 = arith.constant 0 : i32
    return %c0_i32, %c0_i32_0 : i32, i32
  }
  func.func @transform_3(%arg0: i32, %arg1: i32) -> (i32, i32) {
    %c0_i32 = arith.constant 0 : i32
    %c0_i32_0 = arith.constant 0 : i32
    %c0_i32_1 = arith.constant 0 : i32
    return %c0_i32, %c0_i32_0 : i32, i32
  }
  func.func @transform_4(%arg0: i32, %arg1: i32) -> (i32, i32) {
    %c0_i32 = arith.constant 0 : i32
    %c0_i32_0 = arith.constant 0 : i32
    %c0_i32_1 = arith.constant 0 : i32
    return %c0_i32, %c0_i32_0 : i32, i32
  }
  func.func @transform_5(%arg0: i32, %arg1: i32) -> (i32, i32, i32) {
    %c0_i32 = arith.constant 0 : i32
    %c0_i32_0 = arith.constant 0 : i32
    return %arg0, %c0_i32, %arg1 : i32, i32, i32
  }
  func.func @transform_6(%arg0: i32, %arg1: i32) -> (i32, i32, i32) {
    %c0_i32 = arith.constant 0 : i32
    %c0_i32_0 = arith.constant 0 : i32
    return %arg0, %c0_i32, %arg1 : i32, i32, i32
  }
}

</mosaic_0001>

<llo_original>
// kernel: tpu_custom_call.1
$region0: #{tpu_custom_call.1}
  #allocation0 [shape = 'u32[]', space=smem, size = 0x4, offset = 0x4, fixed_abs, tag = 'smem constant byte address 0x4 - core index']
  #allocation1 [shape = 'u32[144,128]{1,0:T(1,128)}', space=vmem, size = 0x12000, scoped, tag = 'internal scratch']
  %s0 = inlined_call_operand.vmem [shape: bf16[2,36,256], index: 0, kind: input, shape index: {}]
  %s1 = inlined_call_operand.vmem [shape: bf16[8,36], index: 1, kind: input, shape index: {}]
  %s2 = inlined_call_operand.vmem [shape: f32[8,1], index: 2, kind: input, shape index: {}]
  %s3 = inlined_call_operand.vmem [shape: bf16[32,8], index: 3, kind: input, shape index: {}]
  %s4 = inlined_call_operand.vmem [shape: f32[32,1], index: 4, kind: input, shape index: {}]
  %s5 = inlined_call_operand.hbm [shape: f32[2,8,256], index: 5, kind: output, shape index: {0}]
  %s6 = inlined_call_operand.hbm [shape: f32[2,32,256], index: 6, kind: output, shape index: {1}]
  %7 = xla_tuple %s5, %s6
  %s8 = sld [smem:[#allocation0]]
  $region61: #{tpu_custom_call.1} parent=0
    _
  %s10 = ssub.s32 1, %s8
  %s11 = scalar_select 0, %s10, %s8
  $region1: #{tpu_custom_call.1} parent=0
    #allocation2 [shape = 'u8[16384]{0}', space=vmem, size = 0x4000, scoped, tag = 'output window, operand 0']
    #allocation3 [shape = 's32[2]{0}', space=sflag, size = 0x8, scoped, tag = 'scoped memory for tpu_custom_call.1']
    #allocation4 [shape = 'u8[65536]{0}', space=vmem, size = 0x10000, scoped, tag = 'output window, operand 1']
    #allocation5 [shape = 's32[2]{0}', space=sflag, size = 0x8, scoped, tag = 'scoped memory for tpu_custom_call.1']
    %12 = vsyncpa [#allocation3], 0
    %s13 = scalar_lea.sflag [#allocation3], 1
    %14 = vsyncpa %s13, 0
    %15 = vsyncpa [#allocation5], 0
    %s16 = scalar_lea.sflag [#allocation5], 1
    %17 = vsyncpa %s16, 0
    loop: start=0, step=1, limit=4
    $region2: #{tpu_custom_call.1} parent=1 // loop_pre_header
      _
    $region3: #{tpu_custom_call.1} parent=1 // loop_header
      %s19 = sphi 0, %s23
      %p20 = scmp.ge.s32.totalorder %s19, 4
      %s26 = sphi 0, %s38
      %s27 = sphi 0, %s34
      %s28 = sphi 0, %s26
      %s29 = sphi 0, %s27
      %s30 = sphi 0, %s28
      %s31 = sphi 0, %s29
      %s43 = sphi 0, %s45
      %s46 = sphi 0, %s43
      %s47 = sphi 0, %s46
      %s63 = sphi 0, %s47
      %s67 = sphi 0, %s67
      %s69 = sphi 0, %s67
      %s70 = sphi 0, %s69
      %s84 = sphi 0, %s70
      %s88 = sphi 0, %s88
      %s90 = sphi 0, %s88
      %s91 = sphi 0, %s90
      %s105 = sphi 0, %s91
      %s109 = sphi 0, %s109
      %s111 = sphi 0, %s109
      %s112 = sphi 0, %s111
      %s126 = sphi 0, %s112
      %s130 = sphi 0, %s130
      %s132 = sphi 0, %s130
      %s133 = sphi 0, %s132
      %s147 = sphi 0, %s133
      %s155 = sphi 0, %s157
      %s158 = sphi 0, %s155
      %s159 = sphi 0, %s158
      %s175 = sphi 0, %s159
      %s183 = sphi 0, %s185
      %s186 = sphi 0, %s183
      %s187 = sphi 0, %s186
      %s203 = sphi 0, %s187
    $region4: #{tpu_custom_call.1} parent=1 // loop_header_branch
      %22 = sbr.rel (%p20) target = $region8
    $region5: #{tpu_custom_call.1} parent=1 // loop_body
      %s24 = ssub.s32 %s19, 1
      %s25 = ssub.s32 %s19, 2
      %s32 = sadd.s32 1, %s27
      %p33 = scmp.ge.s32.totalorder %s32, 1
      %s34 = scalar_select %p33, 0, %s32
      %s35 = sadd.s32 1, %s26
      %s36 = scalar_select %p33, %s35, %s26
      %p37 = scmp.ge.s32.totalorder %s36, 2
      %s38 = scalar_select %p37, 0, %s36
      %s39 = ssub.s32 %s26, %s38
      %s40 = ssub.s32 %s27, %s34
      %s41 = sor.u32 %s39, %s40
      %p42 = scmp.eq.s32.totalorder %s41, 0
      %s44 = sadd.s32 %s43, 1
      %s45 = scalar_select %p42, %s43, %s44
      %p48 = pneg %p42
      %p49 = scmp.eq.s32.totalorder %s19, 1
      %p50 = por %p48, %p49
      %p51 = scmp.ne.s32.totalorder %s43, %s46
      %p52 = scmp.eq.s32.totalorder %s19, 0
      %p53 = por %p51, %p52
      %p54 = scmp.ne.s32.totalorder %s43, %s46
      %p55 = scmp.eq.s32.totalorder %s24, 1
      %p56 = por %p54, %p55
      %p57 = scmp.ne.s32.totalorder %s46, %s47
      %p58 = scmp.eq.s32.totalorder %s24, 0
      %p59 = por %p57, %p58
      %p60 = scmp.ne.s32.totalorder %s46, %s47
      %p61 = scmp.eq.s32.totalorder %s25, 1
      %p62 = por %p60, %p61
      %p64 = scmp.ne.s32.totalorder %s47, %s63
      %p65 = scmp.eq.s32.totalorder %s25, 0
      %p66 = por %p64, %p65
      %s68 = sadd.s32 %s67, 1
      %p71 = scmp.eq.s32.totalorder %s19, 1
      %p72 = scmp.ne.s32.totalorder %s67, %s69
      %p73 = scmp.eq.s32.totalorder %s19, 0
      %p74 = por %p72, %p73
      %p75 = scmp.ne.s32.totalorder %s67, %s69
      %p76 = scmp.eq.s32.totalorder %s24, 1
      %p77 = por %p75, %p76
      %p78 = scmp.ne.s32.totalorder %s69, %s70
      %p79 = scmp.eq.s32.totalorder %s24, 0
      %p80 = por %p78, %p79
      %p81 = scmp.ne.s32.totalorder %s69, %s70
      %p82 = scmp.eq.s32.totalorder %s25, 1
      %p83 = por %p81, %p82
      %p85 = scmp.ne.s32.totalorder %s70, %s84
      %p86 = scmp.eq.s32.totalorder %s25, 0
      %p87 = por %p85, %p86
      %s89 = sadd.s32 %s88, 1
      %p92 = scmp.eq.s32.totalorder %s19, 1
      %p93 = scmp.ne.s32.totalorder %s88, %s90
      %p94 = scmp.eq.s32.totalorder %s19, 0
      %p95 = por %p93, %p94
      %p96 = scmp.ne.s32.totalorder %s88, %s90
      %p97 = scmp.eq.s32.totalorder %s24, 1
      %p98 = por %p96, %p97
      %p99 = scmp.ne.s32.totalorder %s90, %s91
      %p100 = scmp.eq.s32.totalorder %s24, 0
      %p101 = por %p99, %p100
      %p102 = scmp.ne.s32.totalorder %s90, %s91
      %p103 = scmp.eq.s32.totalorder %s25, 1
      %p104 = por %p102, %p103
      %p106 = scmp.ne.s32.totalorder %s91, %s105
      %p107 = scmp.eq.s32.totalorder %s25, 0
      %p108 = por %p106, %p107
      %s110 = sadd.s32 %s109, 1
      %p113 = scmp.eq.s32.totalorder %s19, 1
      %p114 = scmp.ne.s32.totalorder %s109, %s111
      %p115 = scmp.eq.s32.totalorder %s19, 0
      %p116 = por %p114, %p115
      %p117 = scmp.ne.s32.totalorder %s109, %s111
      %p118 = scmp.eq.s32.totalorder %s24, 1
      %p119 = por %p117, %p118
      %p120 = scmp.ne.s32.totalorder %s111, %s112
      %p121 = scmp.eq.s32.totalorder %s24, 0
      %p122 = por %p120, %p121
      %p123 = scmp.ne.s32.totalorder %s111, %s112
      %p124 = scmp.eq.s32.totalorder %s25, 1
      %p125 = por %p123, %p124
      %p127 = scmp.ne.s32.totalorder %s112, %s126
      %p128 = scmp.eq.s32.totalorder %s25, 0
      %p129 = por %p127, %p128
      %s131 = sadd.s32 %s130, 1
      %p134 = scmp.eq.s32.totalorder %s19, 1
      %p135 = scmp.ne.s32.totalorder %s130, %s132
      %p136 = scmp.eq.s32.totalorder %s19, 0
      %p137 = por %p135, %p136
      %p138 = scmp.ne.s32.totalorder %s130, %s132
      %p139 = scmp.eq.s32.totalorder %s24, 1
      %p140 = por %p138, %p139
      %p141 = scmp.ne.s32.totalorder %s132, %s133
      %p142 = scmp.eq.s32.totalorder %s24, 0
      %p143 = por %p141, %p142
      %p144 = scmp.ne.s32.totalorder %s132, %s133
      %p145 = scmp.eq.s32.totalorder %s25, 1
      %p146 = por %p144, %p145
      %p148 = scmp.ne.s32.totalorder %s133, %s147
      %p149 = scmp.eq.s32.totalorder %s25, 0
      %p150 = por %p148, %p149
      %s151 = ssub.s32 %s26, %s38
      %s152 = ssub.s32 %s27, %s34
      %s153 = sor.u32 %s151, %s152
      %p154 = scmp.eq.s32.totalorder %s153, 0
      %s156 = sadd.s32 %s155, 1
      %s157 = scalar_select %p154, %s155, %s156
      %p160 = pneg %p154
      %p161 = scmp.eq.s32.totalorder %s19, 1
      %p162 = por %p160, %p161
      %p163 = scmp.ne.s32.totalorder %s155, %s158
      %p164 = scmp.eq.s32.totalorder %s19, 0
      %p165 = por %p163, %p164
      %p166 = scmp.ne.s32.totalorder %s155, %s158
      %p167 = scmp.eq.s32.totalorder %s24, 1
      %p168 = por %p166, %p167
      %p169 = scmp.ne.s32.totalorder %s158, %s159
      %p170 = scmp.eq.s32.totalorder %s24, 0
      %p171 = por %p169, %p170
      %p172 = scmp.ne.s32.totalorder %s158, %s159
      %p173 = scmp.eq.s32.totalorder %s25, 1
      %p174 = por %p172, %p173
      %p176 = scmp.ne.s32.totalorder %s159, %s175
      %p177 = scmp.eq.s32.totalorder %s25, 0
      %p178 = por %p176, %p177
      %s179 = ssub.s32 %s26, %s38
      %s180 = ssub.s32 %s27, %s34
      %s181 = sor.u32 %s179, %s180
      %p182 = scmp.eq.s32.totalorder %s181, 0
      %s184 = sadd.s32 %s183, 1
      %s185 = scalar_select %p182, %s183, %s184
      %p188 = pneg %p182
      %p189 = scmp.eq.s32.totalorder %s19, 1
      %p190 = por %p188, %p189
      %p191 = scmp.ne.s32.totalorder %s183, %s186
      %p192 = scmp.eq.s32.totalorder %s19, 0
      %p193 = por %p191, %p192
      %p194 = scmp.ne.s32.totalorder %s183, %s186
      %p195 = scmp.eq.s32.totalorder %s24, 1
      %p196 = por %p194, %p195
      %p197 = scmp.ne.s32.totalorder %s186, %s187
      %p198 = scmp.eq.s32.totalorder %s24, 0
      %p199 = por %p197, %p198
      %p200 = scmp.ne.s32.totalorder %s186, %s187
      %p201 = scmp.eq.s32.totalorder %s25, 1
      %p202 = por %p200, %p201
      %p204 = scmp.ne.s32.totalorder %s187, %s203
      %p205 = scmp.eq.s32.totalorder %s25, 0
      %p206 = por %p204, %p205
      %p207 = scmp.le.s32.totalorder 1, %s19
      %p208 = scmp.lt.s32.totalorder %s19, 3
      %p209 = pnand %p207, %p208
      %p210 = pneg %p209
      // Predicated region
      $region9: #{tpu_custom_call.1} parent=5 // pred_check
        _
      $region10: #{tpu_custom_call.1} parent=5 // pred_check_branch
        %212 = sbr.rel (%p209) target = $region12
      $region11: #{tpu_custom_call.1} parent=5 // pred_region
        %s213 = ssub.s32 %s19, 1
        // Predicated region
        $region13: #{tpu_custom_call.1} parent=11 // pred_check
          %p214 = pneg %p80
        $region14: #{tpu_custom_call.1} parent=11 // pred_check_branch
          %216 = sbr.rel (%p214) target = $region16
        $region15: #{tpu_custom_call.1} parent=11 // pred_region
          _
        $region16: #{tpu_custom_call.1} parent=11 // pred_fallthru
          _
        // Predicated region
        $region17: #{tpu_custom_call.1} parent=11 // pred_check
          %p217 = pneg %p101
        $region18: #{tpu_custom_call.1} parent=11 // pred_check_branch
          %219 = sbr.rel (%p217) target = $region20
        $region19: #{tpu_custom_call.1} parent=11 // pred_region
          _
        $region20: #{tpu_custom_call.1} parent=11 // pred_fallthru
          _
        // Predicated region
        $region21: #{tpu_custom_call.1} parent=11 // pred_check
          %p220 = pneg %p122
        $region22: #{tpu_custom_call.1} parent=11 // pred_check_branch
          %222 = sbr.rel (%p220) target = $region24
        $region23: #{tpu_custom_call.1} parent=11 // pred_region
          _
        $region24: #{tpu_custom_call.1} parent=11 // pred_fallthru
          _
        // Predicated region
        $region25: #{tpu_custom_call.1} parent=11 // pred_check
          %p223 = pneg %p143
        $region26: #{tpu_custom_call.1} parent=11 // pred_check_branch
          %225 = sbr.rel (%p223) target = $region28
        $region27: #{tpu_custom_call.1} parent=11 // pred_region
          _
        $region28: #{tpu_custom_call.1} parent=11 // pred_fallthru
          _
      $region12: #{tpu_custom_call.1} parent=5 // pred_fallthru
        _
      %p226 = scmp.lt.s32.totalorder %s19, 2
      // Predicated region
      $region29: #{tpu_custom_call.1} parent=5 // pred_check
        %p227 = pneg %p226
      $region30: #{tpu_custom_call.1} parent=5 // pred_check_branch
        %229 = sbr.rel (%p227) target = $region32
      $region31: #{tpu_custom_call.1} parent=5 // pred_region
        // Predicated region
        $region33: #{tpu_custom_call.1} parent=31 // pred_check
          %p230 = pneg %p53
        $region34: #{tpu_custom_call.1} parent=31 // pred_check_branch
          %232 = sbr.rel (%p230) target = $region36
        $region35: #{tpu_custom_call.1} parent=31 // pred_region
          %s233 = smul.u32 2, %s27
          %p234 = scmp.lt.s32.totalorder %s26, 1
          %s235 = scalar_select %p234, %s26, 1
          %p236 = scmp.lt.s32.totalorder %s233, 1
          %s237 = scalar_select %p236, %s233, 1
          %s238 = smul.addr %s235, 10
          %s239 = sadd.s32 %s237, %s238
          %s240 = smul.addr %s239, 4
          %s241 = scalar_lea.vmem %s0, %s240
          %s242 = smul.u32 2, %s27
        $region36: #{tpu_custom_call.1} parent=31 // pred_fallthru
          _
      $region32: #{tpu_custom_call.1} parent=5 // pred_fallthru
        _
      %p243 = scmp.le.s32.totalorder 1, %s19
      %p244 = scmp.lt.s32.totalorder %s19, 3
      %p245 = pnand %p243, %p244
      %p246 = pneg %p245
      // Predicated region
      $region37: #{tpu_custom_call.1} parent=5 // pred_check
        _
      $region38: #{tpu_custom_call.1} parent=5 // pred_check_branch
        %248 = sbr.rel (%p245) target = $region40
      $region39: #{tpu_custom_call.1} parent=5 // pred_region
        %s249 = ssub.s32 %s19, 1
        %s250 = smul.u32 2, %s29
        %p251 = scmp.lt.s32.totalorder %s28, 1
        %s252 = scalar_select %p251, %s28, 1
        %p253 = scmp.lt.s32.totalorder %s250, 1
        %s254 = scalar_select %p253, %s250, 1
        %s255 = smul.addr %s252, 10
        %s256 = sadd.s32 %s254, %s255
        %s257 = smul.addr %s256, 4
        %s258 = scalar_lea.vmem %s0, %s257
        %p259 = pneg %p59
        %p260 = pneg %p56
        %p261 = pneg %p80
        %p262 = pneg %p77
        %p263 = pneg %p101
        %p264 = pneg %p98
        %p265 = pneg %p122
        %p266 = pneg %p119
        %p267 = pneg %p143
        %p268 = pneg %p140
        %p269 = pneg %p171
        %p270 = pneg %p168
        %s271 = sand.u32 %s158, 1
        %s272 = scalar_lea.sflag [#allocation3], %s271
        %s273 = sand.u32 %s158, 1
        %s274 = smul.addr %s273, 16
        %s275 = scalar_lea.vmem [#allocation2], %s274
        %p276 = pneg %p199
        %p277 = pneg %p196
        %s278 = sand.u32 %s186, 1
        %s279 = scalar_lea.sflag [#allocation5], %s278
        %s280 = sand.u32 %s186, 1
        %s281 = smul.addr %s280, 64
        %s282 = scalar_lea.vmem [#allocation4], %s281
        %s283 = smul.u32 2, %s29
        %p284 = scmp.lt.s32.totalorder %s28, 1
        %s285 = scalar_select %p284, %s28, 1
        %p286 = scmp.lt.s32.totalorder %s283, 1
        %s287 = scalar_select %p286, %s283, 1
        %s288 = smul.addr %s285, 10
        %s289 = sadd.s32 %s287, %s288
        %s290 = smul.addr %s289, 4
        %s291 = scalar_lea.vmem %s0, %s290
        %s292 = smul.u32 2, %s29
        %s293 = smul.u32 2, %s29
        %s294 = smul.u32 2, %s29
        %v296 = vld [vmem:[%s1] sm:$0xf]
        %v297 = vld [vmem:[%s291] sm:$0xff]
        %v298 = vld [vmem:[%s291 + $0x8] sm:$0xff]
        %v299 = vld [vmem:[%s291 + $0x10] sm:$0xff]
        %v300 = vld [vmem:[%s291 + $0x18] sm:$0xff]
        %v301 = vld [vmem:[%s291 + $0x20] sm:$0x33]
        %v302 = vld [vmem:[%s2] sm:$0xff]
        %304 = vset.pattern.permute.xlu0 0
        %305 = vperm.xlu0 %304, %v302
        %v306 = vpop.permute.xlu0 %305
        %v313 = vunpack.c.l.b16 %v297
        %v314 = vunpack.c.h.b16 %v297
        %v315 = vunpack.c.l.b16 %v298
        %v316 = vunpack.c.h.b16 %v298
        %v317 = vunpack.c.l.b16 %v299
        %v318 = vunpack.c.h.b16 %v299
        %v319 = vunpack.c.l.b16 %v300
        %v320 = vunpack.c.h.b16 %v300
        %v321 = vunpack.c.l.b16 %v301
        %v322 = vunpack.c.h.b16 %v301
        %v323 = vpack.c.b16 %v315, %v313
        %v324 = vpack.c.b16 %v316, %v314
        %v325 = vpack.c.b16 %v319, %v317
        %v326 = vpack.c.b16 %v320, %v318
        %v327 = vpack.c.b16 %v321, %v321
        %v328 = vpack.c.b16 %v322, %v322
        %vm333 = vcmask 293888
        %v335 = vsel %vm333, %v296, 0
        %vm337 = vcmask 1041408
        %v339 = vsel %vm337, %v327, 0
        %v342 = vsel %vm337, %v328, 0
        %344 = vmatprep.subr.bf16.mxu0 %v324
        %345 = vmatpush1.bf16.msra.mxu0 %v323
        %346 = vmatprep.subr.bf16.mxu0 %v326
        %347 = vmatpush1.bf16.msra.mxu0 %v325
        %348 = vmatprep.subr.bf16.mxu0 %v342
        %349 = vmatpush1.bf16.msra.mxu0 %v339
        %350 = vmatprep.subr.bf16.mxu0 0
        %351 = vmatpush1.bf16.msra.mxu0 0
        %352 = vmatprep.subr.bf16.mxu0 0
        %353 = vmatpush1.bf16.msra.mxu0 0
        %354 = vmatprep.subr.bf16.mxu0 0
        %355 = vmatpush1.bf16.msra.mxu0 0
        %356 = vmatprep.subr.bf16.mxu0 0
        %357 = vmatpush1.bf16.msra.mxu0 0
        %358 = vmatprep.subr.bf16.mxu0 0
        %359 = vmatpush1.bf16.msra.mxu0 0
        %360 = vmatprep.subr.bf16.mxu0 0
        %361 = vmatpush1.bf16.msra.mxu0 0
        %362 = vmatprep.subr.bf16.mxu0 0
        %363 = vmatpush1.bf16.msra.mxu0 0
        %364 = vmatprep.subr.bf16.mxu0 0
        %365 = vmatpush1.bf16.msra.mxu0 0
        %366 = vmatprep.subr.bf16.mxu0 0
        %367 = vmatpush1.bf16.msra.mxu0 0
        %368 = vmatprep.subr.bf16.mxu0 0
        %369 = vmatpush1.bf16.msra.mxu0 0
        %370 = vmatprep.subr.bf16.mxu0 0
        %371 = vmatpush1.bf16.msra.mxu0 0
        %372 = vmatprep.subr.bf16.mxu0 0
        %373 = vmatpush1.bf16.msra.mxu0 0
        %374 = vmatprep.subr.bf16.mxu0 0
        %375 = vmatpush1.bf16.msra.mxu0 0
        %376 = vmatprep.mubr.bf16.mxu0 0
        %377 = vmatmul.mubr.bf16.gmra.mrb[0].mxu0 %v335
        %v378 = vpop.f32.mrb[0].mxu0
        %v379 = vadd.f32 %v306, %v378
        %v380 = vpop.f32.mrb[0].mxu0
        %v381 = vadd.f32 %v306, %v380
        %v382 = vpop.f32.mrb[0].mxu0
        %v383 = vpop.f32.mrb[0].mxu0
        %384 = vdwg.mxu0
        %v385 = vmax.f32 %v379, 0.0
        %v386 = vmax.f32 %v381, 0.0
        %387 = vst [vmem:[%s275] sm:$0xff] %v385
        %388 = vst [vmem:[%s275 + $0x8] sm:$0xff] %v386
        %v389 = vld [vmem:[%s3] sm:$0xf]
        %v390 = vld [vmem:[%s3 + $0x4] sm:$0xf]
        %v391 = vld [vmem:[%s3 + $0x8] sm:$0xf]
        %v392 = vld [vmem:[%s3 + $0xc] sm:$0xf]
        %v393 = vpack.c.bf16 %v385, %v385
        %v394 = vpack.c.bf16 %v386, %v386
        %v395 = vld [vmem:[%s4] sm:$0xff]
        %v396 = vld [vmem:[%s4 + $0x8] sm:$0xff]
        %v397 = vld [vmem:[%s4 + $0x10] sm:$0xff]
        %v398 = vld [vmem:[%s4 + $0x18] sm:$0xff]
        %400 = vset.pattern.permute.xlu0 0
        %401 = vperm.xlu0 %400, %v395
        %v402 = vpop.permute.xlu0 %401
        %405 = vset.pattern.permute.xlu0 0
        %406 = vperm.xlu0 %405, %v396
        %v407 = vpop.permute.xlu0 %406
        %410 = vset.pattern.permute.xlu0 0
        %411 = vperm.xlu0 %410, %v397
        %v412 = vpop.permute.xlu0 %411
        %415 = vset.pattern.permute.xlu0 0
        %416 = vperm.xlu0 %415, %v398
        %v417 = vpop.permute.xlu0 %416
        %v423 = vunpack.c.l.b16 %v389
        %v424 = vunpack.c.l.b16 %v390
        %v425 = vunpack.c.l.b16 %v391
        %v426 = vunpack.c.l.b16 %v392
        %v427 = vpack.c.b16 %v424, %v423
        %v428 = vpack.c.b16 %v426, %v425
        %vm429 = vcmask 64512
        %v431 = vsel %vm429, %v427, 0
        %v434 = vsel %vm429, %v428, 0
        %vm436 = vcmask 1043456
        %v438 = vsel %vm436, %v393, 0
        %v441 = vsel %vm436, %v394, 0
        %443 = vmatprep.subr.bf16.mxu0 %v441
        %444 = vmatpush1.bf16.msra.mxu0 %v438
        %445 = vmatprep.subr.bf16.mxu0 0
        %446 = vmatpush1.bf16.msra.mxu0 0
        %447 = vmatprep.subr.bf16.mxu0 0
        %448 = vmatpush1.bf16.msra.mxu0 0
        %449 = vmatprep.subr.bf16.mxu0 0
        %450 = vmatpush1.bf16.msra.mxu0 0
        %451 = vmatprep.subr.bf16.mxu0 0
        %452 = vmatpush1.bf16.msra.mxu0 0
        %453 = vmatprep.subr.bf16.mxu0 0
        %454 = vmatpush1.bf16.msra.mxu0 0
        %455 = vmatprep.subr.bf16.mxu0 0
        %456 = vmatpush1.bf16.msra.mxu0 0
        %457 = vmatprep.subr.bf16.mxu0 0
        %458 = vmatpush1.bf16.msra.mxu0 0
        %459 = vmatprep.subr.bf16.mxu0 0
        %460 = vmatpush1.bf16.msra.mxu0 0
        %461 = vmatprep.subr.bf16.mxu0 0
        %462 = vmatpush1.bf16.msra.mxu0 0
        %463 = vmatprep.subr.bf16.mxu0 0
        %464 = vmatpush1.bf16.msra.mxu0 0
        %465 = vmatprep.subr.bf16.mxu0 0
        %466 = vmatpush1.bf16.msra.mxu0 0
        %467 = vmatprep.subr.bf16.mxu0 0
        %468 = vmatpush1.bf16.msra.mxu0 0
        %469 = vmatprep.subr.bf16.mxu0 0
        %470 = vmatpush1.bf16.msra.mxu0 0
        %471 = vmatprep.subr.bf16.mxu0 0
        %472 = vmatpush1.bf16.msra.mxu0 0
        %473 = vmatprep.subr.bf16.mxu0 0
        %474 = vmatpush1.bf16.msra.mxu0 0
        %475 = vmatprep.mubr.bf16.mxu0 0
        %476 = vmatmul.mubr.bf16.gmra.mrb[0].mxu0 %v431
        %v477 = vpop.f32.mrb[0].mxu0
        %v478 = vadd.f32 %v402, %v477
        %v479 = vpop.f32.mrb[0].mxu0
        %v480 = vadd.f32 %v402, %v479
        %v481 = vpop.f32.mrb[0].mxu0
        %v482 = vadd.f32 %v407, %v481
        %v483 = vpop.f32.mrb[0].mxu0
        %v484 = vadd.f32 %v407, %v483
        %485 = vmatprep.mubr.bf16.mxu0 0
        %486 = vmatmul.mubr.bf16.gmra.mrb[0].mxu0 %v434
        %v487 = vpop.f32.mrb[0].mxu0
        %v488 = vadd.f32 %v412, %v487
        %v489 = vpop.f32.mrb[0].mxu0
        %v490 = vadd.f32 %v412, %v489
        %v491 = vpop.f32.mrb[0].mxu0
        %v492 = vadd.f32 %v417, %v491
        %v493 = vpop.f32.mrb[0].mxu0
        %v494 = vadd.f32 %v417, %v493
        %495 = vdwg.mxu0
        %496 = vst [vmem:[%s282] sm:$0xff] %v478
        %497 = vst [vmem:[%s282 + $0x8] sm:$0xff] %v480
        %498 = vst [vmem:[%s282 + $0x10] sm:$0xff] %v482
        %499 = vst [vmem:[%s282 + $0x18] sm:$0xff] %v484
        %500 = vst [vmem:[%s282 + $0x20] sm:$0xff] %v488
        %501 = vst [vmem:[%s282 + $0x28] sm:$0xff] %v490
        %502 = vst [vmem:[%s282 + $0x30] sm:$0xff] %v492
        %503 = vst [vmem:[%s282 + $0x38] sm:$0xff] %v494
        %s504 = sand.u32 %s158, 1
        %s505 = scalar_lea.sflag [#allocation3], %s504
        %s506 = sand.u32 %s158, 1
        %s507 = smul.addr %s506, 16
        %s508 = scalar_lea.vmem [#allocation2], %s507
        %s509 = sand.u32 %s186, 1
        %s510 = scalar_lea.sflag [#allocation5], %s509
        %s511 = sand.u32 %s186, 1
        %s512 = smul.addr %s511, 64
        %s513 = scalar_lea.vmem [#allocation4], %s512
        // Predicated region
        $region41: #{tpu_custom_call.1} parent=39 // pred_check
          %p514 = pneg %p168
        $region42: #{tpu_custom_call.1} parent=39 // pred_check_branch
          %516 = sbr.rel (%p514) target = $region44
        $region43: #{tpu_custom_call.1} parent=39 // pred_region
          %s517 = smul.u32 2, %s29
          %s519 = ssub.s32 256, 256
          %520 = vsyncadd %s505, %s519
          %s521 = smul.addr %s28, 2
          %s522 = sadd.s32 %s517, %s521
          %s523 = smul.addr %s522, 128
          %s524 = scalar_lea.hbm %s5, %s523
          %s526 = sshll.u32 %s508, 4
          %s527 = int_to_ptr.vmem [resolvable:$true] %s526
          %529 = dma.vmem_to_hbm [thread:$0]  %s527, 256, %s524, %s505
        $region44: #{tpu_custom_call.1} parent=39 // pred_fallthru
          _
        // Predicated region
        $region45: #{tpu_custom_call.1} parent=39 // pred_check
          %p530 = pneg %p196
        $region46: #{tpu_custom_call.1} parent=39 // pred_check_branch
          %532 = sbr.rel (%p530) target = $region48
        $region47: #{tpu_custom_call.1} parent=39 // pred_region
          %s533 = smul.u32 2, %s29
          %s535 = ssub.s32 1024, 1024
          %536 = vsyncadd %s510, %s535
          %s537 = smul.addr %s28, 8
          %s538 = sadd.s32 %s533, %s537
          %s539 = smul.addr %s538, 128
          %s540 = scalar_lea.hbm %s6, %s539
          %s541 = sshll.u32 %s513, 4
          %s542 = int_to_ptr.vmem [resolvable:$true] %s541
          %547 = dma.vmem_to_hbm [thread:$0]  %s542, 1024, %s540, %s510, 256, 256, 16
        $region48: #{tpu_custom_call.1} parent=39 // pred_fallthru
          _
      $region40: #{tpu_custom_call.1} parent=5 // pred_fallthru
        _
      %p548 = scmp.le.s32.totalorder 2, %s19
      // Predicated region
      $region49: #{tpu_custom_call.1} parent=5 // pred_check
        %p549 = pneg %p548
      $region50: #{tpu_custom_call.1} parent=5 // pred_check_branch
        %551 = sbr.rel (%p549) target = $region52
      $region51: #{tpu_custom_call.1} parent=5 // pred_region
        %s552 = ssub.s32 %s19, 2
        // Predicated region
        $region53: #{tpu_custom_call.1} parent=51 // pred_check
          %p553 = pneg %p174
        $region54: #{tpu_custom_call.1} parent=51 // pred_check_branch
          %555 = sbr.rel (%p553) target = $region56
        $region55: #{tpu_custom_call.1} parent=51 // pred_region
          %s556 = sand.u32 %s159, 1
          %s557 = scalar_lea.sflag [#allocation3], %s556
          %s558 = sand.u32 %s159, 1
          %s559 = smul.addr %s558, 16
          %s560 = scalar_lea.vmem [#allocation2], %s559
          %561 = dma.done %s557, 256
        $region56: #{tpu_custom_call.1} parent=51 // pred_fallthru
          _
        // Predicated region
        $region57: #{tpu_custom_call.1} parent=51 // pred_check
          %p562 = pneg %p202
        $region58: #{tpu_custom_call.1} parent=51 // pred_check_branch
          %564 = sbr.rel (%p562) target = $region60
        $region59: #{tpu_custom_call.1} parent=51 // pred_region
          %s565 = sand.u32 %s187, 1
          %s566 = scalar_lea.sflag [#allocation5], %s565
          %s567 = sand.u32 %s187, 1
          %s568 = smul.addr %s567, 64
          %s569 = scalar_lea.vmem [#allocation4], %s568
          %570 = dma.done %s566, 1024
        $region60: #{tpu_custom_call.1} parent=51 // pred_fallthru
          _
      $region52: #{tpu_custom_call.1} parent=5 // pred_fallthru
        _
    $region6: #{tpu_custom_call.1} parent=1 // loop_footer
      %s23 = sadd.s32 1, %s19
    $region7: #{tpu_custom_call.1} parent=1 // loop_footer_branch
      %18 = sbr.rel target = $region3
    $region8: #{tpu_custom_call.1} parent=1 // loop_exit
      _
    %571 = vsyncpa [#allocation3], 1
    %s572 = scalar_lea.sflag [#allocation3], 1
    %573 = vsyncpa %s572, 1
    %574 = vsyncpa [#allocation5], 1
    %s575 = scalar_lea.sflag [#allocation5], 1
    %576 = vsyncpa %s575, 1

</llo_original>
